<compile_context>
chip_gen: v6e
topology: v6e:2x2x1
jax: 0.10.0
libtpu: 0.0.40
codegen_flags: <defaults>
</compile_context>

<pallas_src>
import functools

import jax
import jax.numpy as jnp
import numpy as np
from jax.experimental import pallas as pl
from jax.experimental.pallas import tpu as pltpu

NUM_HEADS = 8
LN_EPS = 1e-5  # PyTorch nn.LayerNorm default


def _attn_ln_kernel(q_ref, k_ref, v_ref, mask_ref, resid_ref, gamma_ref, beta_ref,
                    out_ref, ctx_scr, *, num_heads):
    """Masked MHA (one query tile, all heads) + residual + LayerNorm.

    q_ref     : (H, Tq, Dh) bf16, already scaled by 1/sqrt(Dh)
    k_ref     : (H, S,  Dh) bf16
    v_ref     : (H, S,  Dh) bf16
    mask_ref  : (Tq, S)     int8, 1 where adj == 0
    resid_ref : (Tq, Dout)  f32
    gamma/beta: (1, Dout)   f32
    out_ref   : (Tq, Dout)  f32
    ctx_scr   : (H, Tq, Dh) f32 scratch (lane-dense per-head context slabs)
    """
    # Mask shared by all heads.  Stays on the VPU (never fed to the MXU).
    masked = mask_ref[...] != 0                                         # (Tq, S) bool

    def head_body(h, carry):
        qh = q_ref[h]                                                   # (Tq, Dh) bf16
        kh = k_ref[h]                                                   # (S,  Dh) bf16
        vh = v_ref[h]                                                   # (S,  Dh) bf16
        # q @ k^T without materializing a transpose: contract dim 1 of qh with dim 1 of kh.
        scores = jax.lax.dot_general(
            qh, kh, dimension_numbers=(((1,), (1,)), ((), ())),
            preferred_element_type=jnp.float32)                         # (Tq, S) f32
        scores = jnp.where(masked, jnp.float32(-1e9), scores)           # masked_fill semantics
        m = jnp.max(scores, axis=-1, keepdims=True)
        p = jnp.exp(scores - m)
        inv = pl.reciprocal(jnp.sum(p, axis=-1, keepdims=True), approx=True)
        probs = (p * inv).astype(jnp.bfloat16)
        ctx_scr[h] = jnp.dot(probs, vh, preferred_element_type=jnp.float32)
        return carry

    jax.lax.fori_loop(0, num_heads, head_body, 0)

    # Lane-dense head combine: H slabs of (Tq, Dh) -> (Tq, H*Dh).
    context = jnp.concatenate([ctx_scr[h] for h in range(num_heads)], axis=-1)

    # Residual + LayerNorm (f32 elementwise throughout).
    y = context + resid_ref[...]
    mu = jnp.mean(y, axis=-1, keepdims=True)
    var = jnp.mean((y - mu) ** 2, axis=-1, keepdims=True)
    y_norm = (y - mu) * jax.lax.rsqrt(var + LN_EPS)
    out_ref[...] = (y_norm * gamma_ref[...] + beta_ref[...]).astype(out_ref.dtype)


def _round_up(x, m):
    return -(-x // m) * m


def _vmem_budget_bytes():
    """~80% of this chip's physical VMEM: ~51 MiB on v7x (64 MiB), ~102 MiB on v5e/v6e (128 MiB)."""
    try:
        cap = pltpu.get_tpu_info().vmem_capacity_bytes
    except Exception:  # conservative fallback if the hardware query is unavailable
        cap = 64 * 1024 * 1024
    return int(cap * 0.8)


def _choose_q_tile(S, Dout, num_heads, vmem_budget):
    """Largest query tile that divides S and fits the per-step VMEM budget on this device."""
    head_dim = Dout // num_heads
    dh_pad = _round_up(head_dim, 128)          # lane padding of (..., Dh) blocks
    s_pad = _round_up(S, 128)
    dout_pad = _round_up(Dout, 128)

    # K + V resident per batch item (double-buffered bf16 (H, S, Dh) blocks).
    kv_bytes = 2 * 2 * num_heads * S * dh_pad * 2

    def step_bytes(tq):
        q = 2 * num_heads * tq * dh_pad * 2        # bf16 q tile, double buffered
        mask = 2 * tq * s_pad                      # int8 mask tile
        res = 2 * tq * dout_pad * 4                # f32 residual tile
        out = 2 * tq * dout_pad * 4                # f32 output tile
        ctx = num_heads * tq * dh_pad * 4          # f32 context scratch slab
        live = 3 * tq * s_pad * 4                  # live (Tq, S) f32 score/exp temporaries
        return q + mask + res + out + ctx + live

    budget = vmem_budget - kv_bytes - 4 * dout_pad * 4 * 4   # gamma/beta/etc. headroom
    cands = sorted({c for c in (1024, 512, 256, 128, 64, 32, 16, 8) if S % c == 0}
                   | ({S} if S <= 1024 else set()), reverse=True)
    for tq in cands:
        if step_bytes(tq) <= budget:
            return tq
    raise ValueError(
        f"LocalContextAttention: no query tile dividing S={S} fits the VMEM budget "
        f"({vmem_budget} bytes); pad S or reduce the sequence length.")


def local_context_attention(features, adj_matrix, params, *, num_heads=NUM_HEADS, q_tile=None):
    """features: (B, S, Din) f32, adj_matrix: (B, S, S) -> (B, S, Dout) f32."""
    B, S, Din = features.shape
    Dout = params["wq"].shape[1]
    assert Dout % num_heads == 0
    head_dim = Dout // num_heads
    identity_residual = "wr" not in params

    vmem_budget = _vmem_budget_bytes()
    tq = _choose_q_tile(S, Dout, num_heads, vmem_budget) if q_tile is None else q_tile
    assert S % tq == 0
    nt = S // tq

    # ---- hoisted projections (bf16 MXU operands, f32 accumulation) ------------------------
    x_bf = features.astype(jnp.bfloat16)
    scale = 1.0 / float(head_dim) ** 0.5

    def project(w, b, w_scale=1.0):
        y = jnp.einsum("bsd,de->bse", x_bf, (w * w_scale).astype(jnp.bfloat16),
                       preferred_element_type=jnp.float32) + b * w_scale
        return y.reshape(B, S, num_heads, head_dim).transpose(0, 2, 1, 3).astype(jnp.bfloat16)

    q = project(params["wq"], params["bq"], scale)   # 1/sqrt(Dh) folded into the tiny weight
    k = project(params["wk"], params["bk"])
    v = project(params["wv"], params["bv"])

    if identity_residual:
        resid = features             # Din == Dout: PyTorch module has no residual projection
    else:
        resid = jnp.einsum("bsd,de->bse", x_bf, params["wr"].astype(jnp.bfloat16),
                           preferred_element_type=jnp.float32) + params["br"]

    # int8 mask (1 where adj == 0): 4x less mask DMA than shipping f32 adj.
    mask = (adj_matrix == 0).astype(jnp.int8)

    gamma = params["gamma"].reshape(1, Dout)
    beta = params["beta"].reshape(1, Dout)

    kernel = functools.partial(_attn_ln_kernel, num_heads=num_heads)

    in_specs = [
        pl.BlockSpec((None, num_heads, tq, head_dim), lambda b, t: (b, 0, t, 0)),  # q (tiled)
        pl.BlockSpec((None, num_heads, S, head_dim), lambda b, t: (b, 0, 0, 0)),   # k (resident over t)
        pl.BlockSpec((None, num_heads, S, head_dim), lambda b, t: (b, 0, 0, 0)),   # v (resident over t)
        pl.BlockSpec((None, tq, S), lambda b, t: (b, t, 0)),                       # int8 mask (tiled)
        pl.BlockSpec((None, tq, Dout), lambda b, t: (b, t, 0)),                    # residual (tiled)
        pl.BlockSpec((1, Dout), lambda b, t: (0, 0)),                              # gamma
        pl.BlockSpec((1, Dout), lambda b, t: (0, 0)),                              # beta
    ]

    return pl.pallas_call(
        kernel,
        out_shape=jax.ShapeDtypeStruct((B, S, Dout), jnp.float32),
        grid_spec=pltpu.PrefetchScalarGridSpec(
            num_scalar_prefetch=0,
            grid=(B, nt),
            in_specs=in_specs,
            out_specs=pl.BlockSpec((None, tq, Dout), lambda b, t: (b, t, 0)),
            scratch_shapes=[pltpu.VMEM((num_heads, tq, head_dim), jnp.float32)],
        ),
        compiler_params=pltpu.CompilerParams(
            # No cross-step scratch state -> both grid axes are independent (dual-TC friendly).
            dimension_semantics=("parallel", "parallel"),
            vmem_limit_bytes=vmem_budget),
    )(q, k, v, mask, resid, gamma, beta)


def init_params(key, input_dim, output_dim):
    ks = jax.random.split(key, 8)
    scale = 0.1
    p = {
        "wq": scale * jax.random.normal(ks[0], (input_dim, output_dim), jnp.float32),
        "bq": scale * jax.random.normal(ks[1], (output_dim,), jnp.float32),
        "wk": scale * jax.random.normal(ks[2], (input_dim, output_dim), jnp.float32),
        "bk": scale * jax.random.normal(ks[3], (output_dim,), jnp.float32),
        "wv": scale * jax.random.normal(ks[4], (input_dim, output_dim), jnp.float32),
        "bv": scale * jax.random.normal(ks[5], (output_dim,), jnp.float32),
        "gamma": jnp.ones((output_dim,), jnp.float32),
        "beta": jnp.zeros((output_dim,), jnp.float32),
    }
    if input_dim != output_dim:
        p["wr"] = scale * jax.random.normal(ks[6], (input_dim, output_dim), jnp.float32)
        p["br"] = scale * jax.random.normal(ks[7], (output_dim,), jnp.float32)
    # If input_dim == output_dim the PyTorch module has no residual projection: residual = features.
    return p


def reference(features, adj, params, num_heads=NUM_HEADS):
    """Pure-JAX f32 reference matching the PyTorch forward (dropout = identity)."""
    B, S, Din = features.shape
    Dout = params["wq"].shape[1]
    Dh = Dout // num_heads
    q = features @ params["wq"] + params["bq"]
    k = features @ params["wk"] + params["bk"]
    v = features @ params["wv"] + params["bv"]
    q = q.reshape(B, S, num_heads, Dh).transpose(0, 2, 1, 3)
    k = k.reshape(B, S, num_heads, Dh).transpose(0, 2, 1, 3)
    v = v.reshape(B, S, num_heads, Dh).transpose(0, 2, 1, 3)
    scores = jnp.einsum("bhqd,bhkd->bhqk", q, k) / Dh ** 0.5
    mask = (adj[:, None, :, :] == 0.0)
    scores = jnp.where(mask, -1e9, scores)
    probs = jax.nn.softmax(scores, axis=-1)
    ctx = jnp.einsum("bhqk,bhkd->bhqd", probs, v)
    ctx = ctx.transpose(0, 2, 1, 3).reshape(B, S, Dout)
    if "wr" in params:
        resid = features @ params["wr"] + params["br"]
    else:
        resid = features
    y = ctx + resid
    mu = y.mean(-1, keepdims=True)
    var = ((y - mu) ** 2).mean(-1, keepdims=True)
    return (y - mu) * jax.lax.rsqrt(var + LN_EPS) * params["gamma"] + params["beta"]


def _run_case(key, B, S, Din, Dout):
    k_feat, k_adj, k_param = jax.random.split(key, 3)
    features = jax.random.normal(k_feat, (B, S, Din), jnp.float32)
    # random 0/1 adjacency with guaranteed self-connections
    adj = (jax.random.uniform(k_adj, (B, S, S)) > 0.5).astype(jnp.float32)
    adj = jnp.maximum(adj, jnp.eye(S, dtype=jnp.float32)[None])

    params = init_params(k_param, Din, Dout)

    out = jax.block_until_ready(local_context_attention(features, adj, params))
    ref = reference(features, adj, params)
    # bf16 MXU inputs + approx reciprocal introduce ~1e-3 relative error vs the pure-f32 reference.
    np.testing.assert_allclose(np.asarray(out), np.asarray(ref), rtol=2e-2, atol=2e-2)


if __name__ == "__main__":
    key = jax.random.PRNGKey(0)
    k1, k2 = jax.random.split(key)

    # Case 1: input_dim != output_dim (residual projection path).  head_dim = 32 / 8 = 4.
    _run_case(k1, B=2, S=8, Din=16, Dout=32)

    # Case 2: input_dim == output_dim (identity residual, no residual projection).
    _run_case(k2, B=2, S=8, Din=32, Dout=32)

    print("KERNEL_OK")
</pallas_src>

<mosaic_0001>
module attributes {stable_mosaic.version = 11 : i64} {
  func.func @_attn_ln_kernel(%arg0: i32, %arg1: i32, %arg2: memref<1x8x8x4xbf16, #tpu.memory_space<vmem>>, %arg3: memref<1x8x8x4xbf16, #tpu.memory_space<vmem>>, %arg4: memref<1x8x8x4xbf16, #tpu.memory_space<vmem>>, %arg5: memref<1x8x8xi8, #tpu.memory_space<vmem>>, %arg6: memref<1x8x32xf32, #tpu.memory_space<vmem>>, %arg7: memref<1x32xf32, #tpu.memory_space<vmem>>, %arg8: memref<1x32xf32, #tpu.memory_space<vmem>>, %arg9: memref<1x8x32xf32, #tpu.memory_space<vmem>>, %arg10: memref<8x8x4xf32, #tpu.memory_space<vmem>>) attributes {dimension_semantics = [#tpu.dimension_semantics<parallel>, #tpu.dimension_semantics<parallel>], iteration_bounds = array<i64: 2, 1>, scalar_prefetch = 0 : i64, scratch_operands = 1 : i64, tpu.core_type = #tpu.core_type<tc>, window_params = [{transform_indices = @transform_0, window_bounds = array<i64: 1, 8, 8, 4>}, {transform_indices = @transform_1, window_bounds = array<i64: 1, 8, 8, 4>}, {transform_indices = @transform_2, window_bounds = array<i64: 1, 8, 8, 4>}, {transform_indices = @transform_3, window_bounds = array<i64: 1, 8, 8>}, {transform_indices = @transform_4, window_bounds = array<i64: 1, 8, 32>}, {pipeline_mode = #tpu.pipeline_mode<synchronous>, transform_indices = @transform_5, window_bounds = array<i64: 1, 32>}, {pipeline_mode = #tpu.pipeline_mode<synchronous>, transform_indices = @transform_6, window_bounds = array<i64: 1, 32>}, {transform_indices = @transform_7, window_bounds = array<i64: 1, 8, 32>}]} {
    %c0 = arith.constant 0 : index
    %c0_0 = arith.constant 0 : index
    %c0_1 = arith.constant 0 : index
    %0 = vector.load %arg5[%c0, %c0_0, %c0_1] : memref<1x8x8xi8, #tpu.memory_space<vmem>>, vector<1x8x8xi8>
    %1 = vector.shape_cast %0 : vector<1x8x8xi8> to vector<8x8xi8>
    %c0_i8 = arith.constant 0 : i8
    %2 = vector.broadcast %c0_i8 : i8 to vector<8x8xi8>
    %3 = arith.cmpi ne, %1, %2 : vector<8x8xi8>
    %c0_i32 = arith.constant 0 : i32
    %c8_i32 = arith.constant 8 : i32
    %4 = arith.addi %c0_i32, %c8_i32 : i32
    %c1_i32 = arith.constant 1 : i32
    scf.for %arg11 = %c0_i32 to %4 step %c1_i32  : i32 {
      %c0_34 = arith.constant 0 : index
      %52 = arith.index_cast %arg11 : i32 to index
      %c0_35 = arith.constant 0 : index
      %c0_36 = arith.constant 0 : index
      %53 = vector.load %arg2[%c0_34, %52, %c0_35, %c0_36] : memref<1x8x8x4xbf16, #tpu.memory_space<vmem>>, vector<1x1x8x4xbf16>
      %54 = vector.shape_cast %53 : vector<1x1x8x4xbf16> to vector<8x4xbf16>
      %c0_37 = arith.constant 0 : index
      %55 = arith.index_cast %arg11 : i32 to index
      %c0_38 = arith.constant 0 : index
      %c0_39 = arith.constant 0 : index
      %56 = vector.load %arg3[%c0_37, %55, %c0_38, %c0_39] : memref<1x8x8x4xbf16, #tpu.memory_space<vmem>>, vector<1x1x8x4xbf16>
      %57 = vector.shape_cast %56 : vector<1x1x8x4xbf16> to vector<8x4xbf16>
      %c0_40 = arith.constant 0 : index
      %58 = arith.index_cast %arg11 : i32 to index
      %c0_41 = arith.constant 0 : index
      %c0_42 = arith.constant 0 : index
      %59 = vector.load %arg4[%c0_40, %58, %c0_41, %c0_42] : memref<1x8x8x4xbf16, #tpu.memory_space<vmem>>, vector<1x1x8x4xbf16>
      %60 = vector.shape_cast %59 : vector<1x1x8x4xbf16> to vector<8x4xbf16>
      %cst_43 = arith.constant dense<0.000000e+00> : vector<8x8xf32>
      %61 = tpu.matmul %54, %57, %cst_43 {dimension_numbers = #tpu.dot_dimension_numbers<[1], [1], [0], [0], [0, 0, 1, 0], [], []>} : vector<8x4xbf16>, vector<8x4xbf16>, vector<8x8xf32> -> vector<8x8xf32>
      %cst_44 = arith.constant -1.000000e+09 : f32
      %62 = vector.broadcast %cst_44 : f32 to vector<8x8xf32>
      %63 = arith.select %3, %62, %61 : vector<8x8xi1>, vector<8x8xf32>
      %cst_45 = arith.constant dense<0xFF800000> : vector<8xf32>
      %64 = vector.multi_reduction <maximumf>, %63, %cst_45 [1] : vector<8x8xf32> to vector<8xf32>
      %65 = vector.shape_cast %64 : vector<8xf32> to vector<8x1xf32>
      %66 = vector.broadcast %65 : vector<8x1xf32> to vector<8x8xf32>
      %67 = arith.subf %63, %66 : vector<8x8xf32>
      %68 = math.exp %67 : vector<8x8xf32>
      %cst_46 = arith.constant dense<0.000000e+00> : vector<8xf32>
      %69 = vector.multi_reduction <add>, %68, %cst_46 [1] : vector<8x8xf32> to vector<8xf32>
      %70 = vector.shape_cast %69 : vector<8xf32> to vector<8x1xf32>
      %71 = tpu.reciprocal %70 {approx = true} : vector<8x1xf32> -> vector<8x1xf32>
      %72 = vector.broadcast %71 : vector<8x1xf32> to vector<8x8xf32>
      %73 = arith.mulf %68, %72 : vector<8x8xf32>
      %74 = arith.truncf %73 : vector<8x8xf32> to vector<8x8xbf16>
      %cst_47 = arith.constant dense<0.000000e+00> : vector<8x4xf32>
      %75 = tpu.matmul %74, %60, %cst_47 {dimension_numbers = #tpu.dot_dimension_numbers<[1], [0], [0], [1], [0, 0, 1, 1], [], []>} : vector<8x8xbf16>, vector<8x4xbf16>, vector<8x4xf32> -> vector<8x4xf32>
      %76 = arith.index_cast %arg11 : i32 to index
      %c0_48 = arith.constant 0 : index
      %c0_49 = arith.constant 0 : index
      %77 = vector.load %arg10[%76, %c0_48, %c0_49] : memref<8x8x4xf32, #tpu.memory_space<vmem>>, vector<1x8x4xf32>
      %78 = vector.shape_cast %77 : vector<1x8x4xf32> to vector<8x4xf32>
      %79 = vector.shape_cast %75 : vector<8x4xf32> to vector<1x8x4xf32>
      tpu.vector_store %arg10[%76, %c0_48, %c0_49], %79 {strides = array<i32>} : memref<8x8x4xf32, #tpu.memory_space<vmem>>, vector<1x8x4xf32>,
    }
    %c8_i32_2 = arith.constant 8 : i32
    %c0_3 = arith.constant 0 : index
    %c0_4 = arith.constant 0 : index
    %c0_5 = arith.constant 0 : index
    %5 = vector.load %arg10[%c0_3, %c0_4, %c0_5] : memref<8x8x4xf32, #tpu.memory_space<vmem>>, vector<1x8x4xf32>
    %6 = vector.shape_cast %5 : vector<1x8x4xf32> to vector<8x4xf32>
    %c1 = arith.constant 1 : index
    %c0_6 = arith.constant 0 : index
    %c0_7 = arith.constant 0 : index
    %7 = vector.load %arg10[%c1, %c0_6, %c0_7] : memref<8x8x4xf32, #tpu.memory_space<vmem>>, vector<1x8x4xf32>
    %8 = vector.shape_cast %7 : vector<1x8x4xf32> to vector<8x4xf32>
    %c2 = arith.constant 2 : index
    %c0_8 = arith.constant 0 : index
    %c0_9 = arith.constant 0 : index
    %9 = vector.load %arg10[%c2, %c0_8, %c0_9] : memref<8x8x4xf32, #tpu.memory_space<vmem>>, vector<1x8x4xf32>
    %10 = vector.shape_cast %9 : vector<1x8x4xf32> to vector<8x4xf32>
    %c3 = arith.constant 3 : index
    %c0_10 = arith.constant 0 : index
    %c0_11 = arith.constant 0 : index
    %11 = vector.load %arg10[%c3, %c0_10, %c0_11] : memref<8x8x4xf32, #tpu.memory_space<vmem>>, vector<1x8x4xf32>
    %12 = vector.shape_cast %11 : vector<1x8x4xf32> to vector<8x4xf32>
    %c4 = arith.constant 4 : index
    %c0_12 = arith.constant 0 : index
    %c0_13 = arith.constant 0 : index
    %13 = vector.load %arg10[%c4, %c0_12, %c0_13] : memref<8x8x4xf32, #tpu.memory_space<vmem>>, vector<1x8x4xf32>
    %14 = vector.shape_cast %13 : vector<1x8x4xf32> to vector<8x4xf32>
    %c5 = arith.constant 5 : index
    %c0_14 = arith.constant 0 : index
    %c0_15 = arith.constant 0 : index
    %15 = vector.load %arg10[%c5, %c0_14, %c0_15] : memref<8x8x4xf32, #tpu.memory_space<vmem>>, vector<1x8x4xf32>
    %16 = vector.shape_cast %15 : vector<1x8x4xf32> to vector<8x4xf32>
    %c6 = arith.constant 6 : index
    %c0_16 = arith.constant 0 : index
    %c0_17 = arith.constant 0 : index
    %17 = vector.load %arg10[%c6, %c0_16, %c0_17] : memref<8x8x4xf32, #tpu.memory_space<vmem>>, vector<1x8x4xf32>
    %18 = vector.shape_cast %17 : vector<1x8x4xf32> to vector<8x4xf32>
    %c7 = arith.constant 7 : index
    %c0_18 = arith.constant 0 : index
    %c0_19 = arith.constant 0 : index
    %19 = vector.load %arg10[%c7, %c0_18, %c0_19] : memref<8x8x4xf32, #tpu.memory_space<vmem>>, vector<1x8x4xf32>
    %20 = vector.shape_cast %19 : vector<1x8x4xf32> to vector<8x4xf32>
    %21 = tpu.concatenate %6, %8, %10, %12, %14, %16, %18, %20 in 1 : vector<8x4xf32>, vector<8x4xf32>, vector<8x4xf32>, vector<8x4xf32>, vector<8x4xf32>, vector<8x4xf32>, vector<8x4xf32>, vector<8x4xf32> -> vector<8x32xf32>
    %c0_20 = arith.constant 0 : index
    %c0_21 = arith.constant 0 : index
    %c0_22 = arith.constant 0 : index
    %22 = vector.load %arg6[%c0_20, %c0_21, %c0_22] : memref<1x8x32xf32, #tpu.memory_space<vmem>>, vector<1x8x32xf32>
    %23 = vector.shape_cast %22 : vector<1x8x32xf32> to vector<8x32xf32>
    %24 = arith.addf %21, %23 : vector<8x32xf32>
    %cst = arith.constant dense<0.000000e+00> : vector<8xf32>
    %25 = vector.multi_reduction <add>, %24, %cst [1] : vector<8x32xf32> to vector<8xf32>
    %26 = vector.shape_cast %25 : vector<8xf32> to vector<8x1xf32>
    %cst_23 = arith.constant 3.200000e+01 : f32
    %27 = vector.broadcast %cst_23 : f32 to vector<8x1xf32>
    %28 = arith.divf %26, %27 : vector<8x1xf32>
    %29 = vector.broadcast %28 : vector<8x1xf32> to vector<8x32xf32>
    %30 = arith.subf %24, %29 : vector<8x32xf32>
    %31 = arith.mulf %30, %30 : vector<8x32xf32>
    %cst_24 = arith.constant dense<0.000000e+00> : vector<8xf32>
    %32 = vector.multi_reduction <add>, %31, %cst_24 [1] : vector<8x32xf32> to vector<8xf32>
    %33 = vector.shape_cast %32 : vector<8xf32> to vector<8x1xf32>
    %cst_25 = arith.constant 3.200000e+01 : f32
    %34 = vector.broadcast %cst_25 : f32 to vector<8x1xf32>
    %35 = arith.divf %33, %34 : vector<8x1xf32>
    %36 = vector.broadcast %28 : vector<8x1xf32> to vector<8x32xf32>
    %37 = arith.subf %24, %36 : vector<8x32xf32>
    %cst_26 = arith.constant 9.99999974E-6 : f32
    %38 = vector.broadcast %cst_26 : f32 to vector<8x1xf32>
    %39 = arith.addf %35, %38 : vector<8x1xf32>
    %40 = math.rsqrt %39 : vector<8x1xf32>
    %41 = vector.broadcast %40 : vector<8x1xf32> to vector<8x32xf32>
    %42 = arith.mulf %37, %41 : vector<8x32xf32>
    %c0_27 = arith.constant 0 : index
    %c0_28 = arith.constant 0 : index
    %43 = vector.load %arg7[%c0_27, %c0_28] : memref<1x32xf32, #tpu.memory_space<vmem>>, vector<1x32xf32>
    %44 = vector.broadcast %43 : vector<1x32xf32> to vector<8x32xf32>
    %45 = arith.mulf %42, %44 : vector<8x32xf32>
    %c0_29 = arith.constant 0 : index
    %c0_30 = arith.constant 0 : index
    %46 = vector.load %arg8[%c0_29, %c0_30] : memref<1x32xf32, #tpu.memory_space<vmem>>, vector<1x32xf32>
    %47 = vector.broadcast %46 : vector<1x32xf32> to vector<8x32xf32>
    %48 = arith.addf %45, %47 : vector<8x32xf32>
    %c0_31 = arith.constant 0 : index
    %c0_32 = arith.constant 0 : index
    %c0_33 = arith.constant 0 : index
    %49 = vector.load %arg9[%c0_31, %c0_32, %c0_33] : memref<1x8x32xf32, #tpu.memory_space<vmem>>, vector<1x8x32xf32>
    %50 = vector.shape_cast %49 : vector<1x8x32xf32> to vector<8x32xf32>
    %51 = vector.shape_cast %48 : vector<8x32xf32> to vector<1x8x32xf32>
    tpu.vector_store %arg9[%c0_31, %c0_32, %c0_33], %51 {strides = array<i32>} : memref<1x8x32xf32, #tpu.memory_space<vmem>>, vector<1x8x32xf32>,
    return
  }
  func.func @transform_0(%arg0: i32, %arg1: i32) -> (i32, i32, i32, i32) {
    %c0_i32 = arith.constant 0 : i32
    %c0_i32_0 = arith.constant 0 : i32
    %c0_i32_1 = arith.constant 0 : i32
    return %arg0, %c0_i32, %arg1, %c0_i32_0 : i32, i32, i32, i32
  }
  func.func @transform_1(%arg0: i32, %arg1: i32) -> (i32, i32, i32, i32) {
    %c0_i32 = arith.constant 0 : i32
    %c0_i32_0 = arith.constant 0 : i32
    %c0_i32_1 = arith.constant 0 : i32
    %c0_i32_2 = arith.constant 0 : i32
    return %arg0, %c0_i32, %c0_i32_0, %c0_i32_1 : i32, i32, i32, i32
  }
  func.func @transform_2(%arg0: i32, %arg1: i32) -> (i32, i32, i32, i32) {
    %c0_i32 = arith.constant 0 : i32
    %c0_i32_0 = arith.constant 0 : i32
    %c0_i32_1 = arith.constant 0 : i32
    %c0_i32_2 = arith.constant 0 : i32
    return %arg0, %c0_i32, %c0_i32_0, %c0_i32_1 : i32, i32, i32, i32
  }
  func.func @transform_3(%arg0: i32, %arg1: i32) -> (i32, i32, i32) {
    %c0_i32 = arith.constant 0 : i32
    %c0_i32_0 = arith.constant 0 : i32
    return %arg0, %arg1, %c0_i32 : i32, i32, i32
  }
  func.func @transform_4(%arg0: i32, %arg1: i32) -> (i32, i32, i32) {
    %c0_i32 = arith.constant 0 : i32
    %c0_i32_0 = arith.constant 0 : i32
    return %arg0, %arg1, %c0_i32 : i32, i32, i32
  }
  func.func @transform_5(%arg0: i32, %arg1: i32) -> (i32, i32) {
    %c0_i32 = arith.constant 0 : i32
    %c0_i32_0 = arith.constant 0 : i32
    %c0_i32_1 = arith.constant 0 : i32
    return %c0_i32, %c0_i32_0 : i32, i32
  }
  func.func @transform_6(%arg0: i32, %arg1: i32) -> (i32, i32) {
    %c0_i32 = arith.constant 0 : i32
    %c0_i32_0 = arith.constant 0 : i32
    %c0_i32_1 = arith.constant 0 : i32
    return %c0_i32, %c0_i32_0 : i32, i32
  }
  func.func @transform_7(%arg0: i32, %arg1: i32) -> (i32, i32, i32) {
    %c0_i32 = arith.constant 0 : i32
    %c0_i32_0 = arith.constant 0 : i32
    return %arg0, %arg1, %c0_i32 : i32, i32, i32
  }
}

</mosaic_0001>

<llo_original>
// kernel: tpu_custom_call.1
$region0: #{tpu_custom_call.1}
  #allocation0 [shape = 'u32[]', space=smem, size = 0x4, offset = 0x4, fixed_abs, tag = 'smem constant byte address 0x4 - core index']
  #allocation1 [shape = 'u32[144,128]{1,0:T(1,128)}', space=vmem, size = 0x12000, scoped, tag = 'internal scratch']
  #allocation2 [shape = 'f32[8,8,4]{2,1,0:T(8,128)}', space=vmem, size = 0x8000, scoped, tag = 'scratch operand']
  %s0 = inlined_call_operand.vmem [shape: bf16[2,8,8,4], index: 0, kind: input, shape index: {}]
  %s1 = inlined_call_operand.vmem [shape: bf16[2,8,8,4], index: 1, kind: input, shape index: {}]
  %s2 = inlined_call_operand.vmem [shape: bf16[2,8,8,4], index: 2, kind: input, shape index: {}]
  %s3 = inlined_call_operand.vmem [shape: s8[2,8,8], index: 3, kind: input, shape index: {}]
  %s4 = inlined_call_operand.vmem [shape: f32[2,8,32], index: 4, kind: input, shape index: {}]
  %s5 = inlined_call_operand.vmem [shape: f32[1,32], index: 5, kind: input, shape index: {}]
  %s6 = inlined_call_operand.vmem [shape: f32[1,32], index: 6, kind: input, shape index: {}]
  %s7 = inlined_call_operand.hbm [shape: f32[2,8,32], index: 7, kind: output, shape index: {}]
  %s8 = sld [smem:[#allocation0]]
  $region68: #{tpu_custom_call.1} parent=0
    _
  %s10 = ssub.s32 1, %s8
  %s11 = scalar_select 0, %s10, %s8
  $region1: #{tpu_custom_call.1} parent=0
    #allocation3 [shape = 'u8[8192]{0}', space=vmem, size = 0x2000, scoped, tag = 'output window, operand 0']
    #allocation4 [shape = 's32[2]{0}', space=sflag, size = 0x8, scoped, tag = 'scoped memory for tpu_custom_call.1']
    %12 = vsyncpa [#allocation4], 0
    %s13 = scalar_lea.sflag [#allocation4], 1
    %14 = vsyncpa %s13, 0
    loop: start=0, step=1, limit=4
    $region2: #{tpu_custom_call.1} parent=1 // loop_pre_header
      _
    $region3: #{tpu_custom_call.1} parent=1 // loop_header
      %s16 = sphi 0, %s20
      %p17 = scmp.ge.s32.totalorder %s16, 4
      %s23 = sphi 0, %s35
      %s24 = sphi 0, %s31
      %s25 = sphi 0, %s23
      %s26 = sphi 0, %s24
      %s27 = sphi 0, %s25
      %s28 = sphi 0, %s26
      %s40 = sphi 0, %s42
      %s43 = sphi 0, %s40
      %s44 = sphi 0, %s43
      %s60 = sphi 0, %s44
      %s66 = sphi 0, %s68
      %s69 = sphi 0, %s66
      %s70 = sphi 0, %s69
      %s86 = sphi 0, %s70
      %s92 = sphi 0, %s94
      %s95 = sphi 0, %s92
      %s96 = sphi 0, %s95
      %s112 = sphi 0, %s96
      %s120 = sphi 0, %s122
      %s123 = sphi 0, %s120
      %s124 = sphi 0, %s123
      %s140 = sphi 0, %s124
      %s148 = sphi 0, %s150
      %s151 = sphi 0, %s148
      %s152 = sphi 0, %s151
      %s168 = sphi 0, %s152
      %s172 = sphi 0, %s172
      %s174 = sphi 0, %s172
      %s175 = sphi 0, %s174
      %s189 = sphi 0, %s175
      %s193 = sphi 0, %s193
      %s195 = sphi 0, %s193
      %s196 = sphi 0, %s195
      %s210 = sphi 0, %s196
      %s218 = sphi 0, %s220
      %s221 = sphi 0, %s218
      %s222 = sphi 0, %s221
      %s238 = sphi 0, %s222
    $region4: #{tpu_custom_call.1} parent=1 // loop_header_branch
      %19 = sbr.rel (%p17) target = $region8
    $region5: #{tpu_custom_call.1} parent=1 // loop_body
      %s21 = ssub.s32 %s16, 1
      %s22 = ssub.s32 %s16, 2
      %s29 = sadd.s32 1, %s24
      %p30 = scmp.ge.s32.totalorder %s29, 1
      %s31 = scalar_select %p30, 0, %s29
      %s32 = sadd.s32 1, %s23
      %s33 = scalar_select %p30, %s32, %s23
      %p34 = scmp.ge.s32.totalorder %s33, 2
      %s35 = scalar_select %p34, 0, %s33
      %s36 = ssub.s32 %s23, %s35
      %s37 = ssub.s32 %s24, %s31
      %s38 = sor.u32 %s36, %s37
      %p39 = scmp.eq.s32.totalorder %s38, 0
      %s41 = sadd.s32 %s40, 1
      %s42 = scalar_select %p39, %s40, %s41
      %p45 = pneg %p39
      %p46 = scmp.eq.s32.totalorder %s16, 1
      %p47 = por %p45, %p46
      %p48 = scmp.ne.s32.totalorder %s40, %s43
      %p49 = scmp.eq.s32.totalorder %s16, 0
      %p50 = por %p48, %p49
      %p51 = scmp.ne.s32.totalorder %s40, %s43
      %p52 = scmp.eq.s32.totalorder %s21, 1
      %p53 = por %p51, %p52
      %p54 = scmp.ne.s32.totalorder %s43, %s44
      %p55 = scmp.eq.s32.totalorder %s21, 0
      %p56 = por %p54, %p55
      %p57 = scmp.ne.s32.totalorder %s43, %s44
      %p58 = scmp.eq.s32.totalorder %s22, 1
      %p59 = por %p57, %p58
      %p61 = scmp.ne.s32.totalorder %s44, %s60
      %p62 = scmp.eq.s32.totalorder %s22, 0
      %p63 = por %p61, %p62
      %s64 = ssub.s32 %s23, %s35
      %p65 = scmp.eq.s32.totalorder %s64, 0
      %s67 = sadd.s32 %s66, 1
      %s68 = scalar_select %p65, %s66, %s67
      %p71 = pneg %p65
      %p72 = scmp.eq.s32.totalorder %s16, 1
      %p73 = por %p71, %p72
      %p74 = scmp.ne.s32.totalorder %s66, %s69
      %p75 = scmp.eq.s32.totalorder %s16, 0
      %p76 = por %p74, %p75
      %p77 = scmp.ne.s32.totalorder %s66, %s69
      %p78 = scmp.eq.s32.totalorder %s21, 1
      %p79 = por %p77, %p78
      %p80 = scmp.ne.s32.totalorder %s69, %s70
      %p81 = scmp.eq.s32.totalorder %s21, 0
      %p82 = por %p80, %p81
      %p83 = scmp.ne.s32.totalorder %s69, %s70
      %p84 = scmp.eq.s32.totalorder %s22, 1
      %p85 = por %p83, %p84
      %p87 = scmp.ne.s32.totalorder %s70, %s86
      %p88 = scmp.eq.s32.totalorder %s22, 0
      %p89 = por %p87, %p88
      %s90 = ssub.s32 %s23, %s35
      %p91 = scmp.eq.s32.totalorder %s90, 0
      %s93 = sadd.s32 %s92, 1
      %s94 = scalar_select %p91, %s92, %s93
      %p97 = pneg %p91
      %p98 = scmp.eq.s32.totalorder %s16, 1
      %p99 = por %p97, %p98
      %p100 = scmp.ne.s32.totalorder %s92, %s95
      %p101 = scmp.eq.s32.totalorder %s16, 0
      %p102 = por %p100, %p101
      %p103 = scmp.ne.s32.totalorder %s92, %s95
      %p104 = scmp.eq.s32.totalorder %s21, 1
      %p105 = por %p103, %p104
      %p106 = scmp.ne.s32.totalorder %s95, %s96
      %p107 = scmp.eq.s32.totalorder %s21, 0
      %p108 = por %p106, %p107
      %p109 = scmp.ne.s32.totalorder %s95, %s96
      %p110 = scmp.eq.s32.totalorder %s22, 1
      %p111 = por %p109, %p110
      %p113 = scmp.ne.s32.totalorder %s96, %s112
      %p114 = scmp.eq.s32.totalorder %s22, 0
      %p115 = por %p113, %p114
      %s116 = ssub.s32 %s23, %s35
      %s117 = ssub.s32 %s24, %s31
      %s118 = sor.u32 %s116, %s117
      %p119 = scmp.eq.s32.totalorder %s118, 0
      %s121 = sadd.s32 %s120, 1
      %s122 = scalar_select %p119, %s120, %s121
      %p125 = pneg %p119
      %p126 = scmp.eq.s32.totalorder %s16, 1
      %p127 = por %p125, %p126
      %p128 = scmp.ne.s32.totalorder %s120, %s123
      %p129 = scmp.eq.s32.totalorder %s16, 0
      %p130 = por %p128, %p129
      %p131 = scmp.ne.s32.totalorder %s120, %s123
      %p132 = scmp.eq.s32.totalorder %s21, 1
      %p133 = por %p131, %p132
      %p134 = scmp.ne.s32.totalorder %s123, %s124
      %p135 = scmp.eq.s32.totalorder %s21, 0
      %p136 = por %p134, %p135
      %p137 = scmp.ne.s32.totalorder %s123, %s124
      %p138 = scmp.eq.s32.totalorder %s22, 1
      %p139 = por %p137, %p138
      %p141 = scmp.ne.s32.totalorder %s124, %s140
      %p142 = scmp.eq.s32.totalorder %s22, 0
      %p143 = por %p141, %p142
      %s144 = ssub.s32 %s23, %s35
      %s145 = ssub.s32 %s24, %s31
      %s146 = sor.u32 %s144, %s145
      %p147 = scmp.eq.s32.totalorder %s146, 0
      %s149 = sadd.s32 %s148, 1
      %s150 = scalar_select %p147, %s148, %s149
      %p153 = pneg %p147
      %p154 = scmp.eq.s32.totalorder %s16, 1
      %p155 = por %p153, %p154
      %p156 = scmp.ne.s32.totalorder %s148, %s151
      %p157 = scmp.eq.s32.totalorder %s16, 0
      %p158 = por %p156, %p157
      %p159 = scmp.ne.s32.totalorder %s148, %s151
      %p160 = scmp.eq.s32.totalorder %s21, 1
      %p161 = por %p159, %p160
      %p162 = scmp.ne.s32.totalorder %s151, %s152
      %p163 = scmp.eq.s32.totalorder %s21, 0
      %p164 = por %p162, %p163
      %p165 = scmp.ne.s32.totalorder %s151, %s152
      %p166 = scmp.eq.s32.totalorder %s22, 1
      %p167 = por %p165, %p166
      %p169 = scmp.ne.s32.totalorder %s152, %s168
      %p170 = scmp.eq.s32.totalorder %s22, 0
      %p171 = por %p169, %p170
      %s173 = sadd.s32 %s172, 1
      %p176 = scmp.eq.s32.totalorder %s16, 1
      %p177 = scmp.ne.s32.totalorder %s172, %s174
      %p178 = scmp.eq.s32.totalorder %s16, 0
      %p179 = por %p177, %p178
      %p180 = scmp.ne.s32.totalorder %s172, %s174
      %p181 = scmp.eq.s32.totalorder %s21, 1
      %p182 = por %p180, %p181
      %p183 = scmp.ne.s32.totalorder %s174, %s175
      %p184 = scmp.eq.s32.totalorder %s21, 0
      %p185 = por %p183, %p184
      %p186 = scmp.ne.s32.totalorder %s174, %s175
      %p187 = scmp.eq.s32.totalorder %s22, 1
      %p188 = por %p186, %p187
      %p190 = scmp.ne.s32.totalorder %s175, %s189
      %p191 = scmp.eq.s32.totalorder %s22, 0
      %p192 = por %p190, %p191
      %s194 = sadd.s32 %s193, 1
      %p197 = scmp.eq.s32.totalorder %s16, 1
      %p198 = scmp.ne.s32.totalorder %s193, %s195
      %p199 = scmp.eq.s32.totalorder %s16, 0
      %p200 = por %p198, %p199
      %p201 = scmp.ne.s32.totalorder %s193, %s195
      %p202 = scmp.eq.s32.totalorder %s21, 1
      %p203 = por %p201, %p202
      %p204 = scmp.ne.s32.totalorder %s195, %s196
      %p205 = scmp.eq.s32.totalorder %s21, 0
      %p206 = por %p204, %p205
      %p207 = scmp.ne.s32.totalorder %s195, %s196
      %p208 = scmp.eq.s32.totalorder %s22, 1
      %p209 = por %p207, %p208
      %p211 = scmp.ne.s32.totalorder %s196, %s210
      %p212 = scmp.eq.s32.totalorder %s22, 0
      %p213 = por %p211, %p212
      %s214 = ssub.s32 %s23, %s35
      %s215 = ssub.s32 %s24, %s31
      %s216 = sor.u32 %s214, %s215
      %p217 = scmp.eq.s32.totalorder %s216, 0
      %s219 = sadd.s32 %s218, 1
      %s220 = scalar_select %p217, %s218, %s219
      %p223 = pneg %p217
      %p224 = scmp.eq.s32.totalorder %s16, 1
      %p225 = por %p223, %p224
      %p226 = scmp.ne.s32.totalorder %s218, %s221
      %p227 = scmp.eq.s32.totalorder %s16, 0
      %p228 = por %p226, %p227
      %p229 = scmp.ne.s32.totalorder %s218, %s221
      %p230 = scmp.eq.s32.totalorder %s21, 1
      %p231 = por %p229, %p230
      %p232 = scmp.ne.s32.totalorder %s221, %s222
      %p233 = scmp.eq.s32.totalorder %s21, 0
      %p234 = por %p232, %p233
      %p235 = scmp.ne.s32.totalorder %s221, %s222
      %p236 = scmp.eq.s32.totalorder %s22, 1
      %p237 = por %p235, %p236
      %p239 = scmp.ne.s32.totalorder %s222, %s238
      %p240 = scmp.eq.s32.totalorder %s22, 0
      %p241 = por %p239, %p240
      %p242 = scmp.le.s32.totalorder 1, %s16
      %p243 = scmp.lt.s32.totalorder %s16, 3
      %p244 = pnand %p242, %p243
      %p245 = pneg %p244
      // Predicated region
      $region9: #{tpu_custom_call.1} parent=5 // pred_check
        _
      $region10: #{tpu_custom_call.1} parent=5 // pred_check_branch
        %247 = sbr.rel (%p244) target = $region12
      $region11: #{tpu_custom_call.1} parent=5 // pred_region
        %s248 = ssub.s32 %s16, 1
        // Predicated region
        $region13: #{tpu_custom_call.1} parent=11 // pred_check
          %p249 = pneg %p185
        $region14: #{tpu_custom_call.1} parent=11 // pred_check_branch
          %251 = sbr.rel (%p249) target = $region16
        $region15: #{tpu_custom_call.1} parent=11 // pred_region
          _
        $region16: #{tpu_custom_call.1} parent=11 // pred_fallthru
          _
        // Predicated region
        $region17: #{tpu_custom_call.1} parent=11 // pred_check
          %p252 = pneg %p206
        $region18: #{tpu_custom_call.1} parent=11 // pred_check_branch
          %254 = sbr.rel (%p252) target = $region20
        $region19: #{tpu_custom_call.1} parent=11 // pred_region
          _
        $region20: #{tpu_custom_call.1} parent=11 // pred_fallthru
          _
      $region12: #{tpu_custom_call.1} parent=5 // pred_fallthru
        _
      %p255 = scmp.lt.s32.totalorder %s16, 2
      // Predicated region
      $region21: #{tpu_custom_call.1} parent=5 // pred_check
        %p256 = pneg %p255
      $region22: #{tpu_custom_call.1} parent=5 // pred_check_branch
        %258 = sbr.rel (%p256) target = $region24
      $region23: #{tpu_custom_call.1} parent=5 // pred_region
        // Predicated region
        $region25: #{tpu_custom_call.1} parent=23 // pred_check
          %p259 = pneg %p50
        $region26: #{tpu_custom_call.1} parent=23 // pred_check_branch
          %261 = sbr.rel (%p259) target = $region28
        $region27: #{tpu_custom_call.1} parent=23 // pred_region
          %p262 = scmp.lt.s32.totalorder %s23, 1
          %s263 = scalar_select %p262, %s23, 1
          %p264 = scmp.lt.s32.totalorder %s24, 0
          %s265 = scalar_select %p264, %s24, 0
          %s266 = smul.addr %s263, 8
          %s267 = sadd.s32 %s265, %s266
          %s268 = smul.addr %s267, 4
          %s269 = scalar_lea.vmem %s0, %s268
        $region28: #{tpu_custom_call.1} parent=23 // pred_fallthru
          _
        // Predicated region
        $region29: #{tpu_custom_call.1} parent=23 // pred_check
          %p270 = pneg %p76
        $region30: #{tpu_custom_call.1} parent=23 // pred_check_branch
          %272 = sbr.rel (%p270) target = $region32
        $region31: #{tpu_custom_call.1} parent=23 // pred_region
          %p273 = scmp.lt.s32.totalorder %s23, 1
          %s274 = scalar_select %p273, %s23, 1
          %s275 = smul.addr %s274, 8
          %s276 = smul.addr %s275, 4
          %s277 = scalar_lea.vmem %s1, %s276
        $region32: #{tpu_custom_call.1} parent=23 // pred_fallthru
          _
        // Predicated region
        $region33: #{tpu_custom_call.1} parent=23 // pred_check
          %p278 = pneg %p102
        $region34: #{tpu_custom_call.1} parent=23 // pred_check_branch
          %280 = sbr.rel (%p278) target = $region36
        $region35: #{tpu_custom_call.1} parent=23 // pred_region
          %p281 = scmp.lt.s32.totalorder %s23, 1
          %s282 = scalar_select %p281, %s23, 1
          %s283 = smul.addr %s282, 8
          %s284 = smul.addr %s283, 4
          %s285 = scalar_lea.vmem %s2, %s284
        $region36: #{tpu_custom_call.1} parent=23 // pred_fallthru
          _
        // Predicated region
        $region37: #{tpu_custom_call.1} parent=23 // pred_check
          %p286 = pneg %p130
        $region38: #{tpu_custom_call.1} parent=23 // pred_check_branch
          %288 = sbr.rel (%p286) target = $region40
        $region39: #{tpu_custom_call.1} parent=23 // pred_region
          %p289 = scmp.lt.s32.totalorder %s23, 1
          %s290 = scalar_select %p289, %s23, 1
          %p291 = scmp.lt.s32.totalorder %s24, 0
          %s292 = scalar_select %p291, %s24, 0
          %s293 = sadd.s32 %s292, %s290
          %s294 = smul.addr %s293, 2
          %s295 = scalar_lea.vmem %s3, %s294
        $region40: #{tpu_custom_call.1} parent=23 // pred_fallthru
          _
        // Predicated region
        $region41: #{tpu_custom_call.1} parent=23 // pred_check
          %p296 = pneg %p158
        $region42: #{tpu_custom_call.1} parent=23 // pred_check_branch
          %298 = sbr.rel (%p296) target = $region44
        $region43: #{tpu_custom_call.1} parent=23 // pred_region
          %p299 = scmp.lt.s32.totalorder %s23, 1
          %s300 = scalar_select %p299, %s23, 1
          %p301 = scmp.lt.s32.totalorder %s24, 0
          %s302 = scalar_select %p301, %s24, 0
          %s303 = sadd.s32 %s302, %s300
          %s304 = smul.addr %s303, 8
          %s305 = scalar_lea.vmem %s4, %s304
        $region44: #{tpu_custom_call.1} parent=23 // pred_fallthru
          _
      $region24: #{tpu_custom_call.1} parent=5 // pred_fallthru
        _
      %p306 = scmp.le.s32.totalorder 1, %s16
      %p307 = scmp.lt.s32.totalorder %s16, 3
      %p308 = pnand %p306, %p307
      %p309 = pneg %p308
      // Predicated region
      $region45: #{tpu_custom_call.1} parent=5 // pred_check
        _
      $region46: #{tpu_custom_call.1} parent=5 // pred_check_branch
        %311 = sbr.rel (%p308) target = $region48
      $region47: #{tpu_custom_call.1} parent=5 // pred_region
        %s312 = ssub.s32 %s16, 1
        %p313 = scmp.lt.s32.totalorder %s25, 1
        %s314 = scalar_select %p313, %s25, 1
        %p315 = scmp.lt.s32.totalorder %s26, 0
        %s316 = scalar_select %p315, %s26, 0
        %s317 = smul.addr %s314, 8
        %s318 = sadd.s32 %s316, %s317
        %s319 = smul.addr %s318, 4
        %s320 = scalar_lea.vmem %s0, %s319
        %p321 = pneg %p56
        %p322 = pneg %p53
        %p323 = scmp.lt.s32.totalorder %s25, 1
        %s324 = scalar_select %p323, %s25, 1
        %s325 = smul.addr %s324, 8
        %s326 = smul.addr %s325, 4
        %s327 = scalar_lea.vmem %s1, %s326
        %p328 = pneg %p82
        %p329 = pneg %p79
        %p330 = scmp.lt.s32.totalorder %s25, 1
        %s331 = scalar_select %p330, %s25, 1
        %s332 = smul.addr %s331, 8
        %s333 = smul.addr %s332, 4
        %s334 = scalar_lea.vmem %s2, %s333
        %p335 = pneg %p108
        %p336 = pneg %p105
        %p337 = scmp.lt.s32.totalorder %s25, 1
        %s338 = scalar_select %p337, %s25, 1
        %p339 = scmp.lt.s32.totalorder %s26, 0
        %s340 = scalar_select %p339, %s26, 0
        %s341 = sadd.s32 %s340, %s338
        %s342 = smul.addr %s341, 2
        %s343 = scalar_lea.vmem %s3, %s342
        %p344 = pneg %p136
        %p345 = pneg %p133
        %p346 = scmp.lt.s32.totalorder %s25, 1
        %s347 = scalar_select %p346, %s25, 1
        %p348 = scmp.lt.s32.totalorder %s26, 0
        %s349 = scalar_select %p348, %s26, 0
        %s350 = sadd.s32 %s349, %s347
        %s351 = smul.addr %s350, 8
        %s352 = scalar_lea.vmem %s4, %s351
        %p353 = pneg %p164
        %p354 = pneg %p161
        %p355 = pneg %p185
        %p356 = pneg %p182
        %p357 = pneg %p206
        %p358 = pneg %p203
        %p359 = pneg %p234
        %p360 = pneg %p231
        %s361 = sand.u32 %s221, 1
        %s362 = scalar_lea.sflag [#allocation4], %s361
        %s363 = sand.u32 %s221, 1
        %s364 = smul.addr %s363, 8
        %s365 = scalar_lea.vmem [#allocation3], %s364
        %p366 = scmp.lt.s32.totalorder %s25, 1
        %s367 = scalar_select %p366, %s25, 1
        %p368 = scmp.lt.s32.totalorder %s26, 0
        %s369 = scalar_select %p368, %s26, 0
        %s370 = smul.addr %s367, 8
        %s371 = sadd.s32 %s369, %s370
        %s372 = smul.addr %s371, 4
        %s373 = scalar_lea.vmem %s0, %s372
        %p374 = scmp.lt.s32.totalorder %s25, 1
        %s375 = scalar_select %p374, %s25, 1
        %s376 = smul.addr %s375, 8
        %s377 = smul.addr %s376, 4
        %s378 = scalar_lea.vmem %s1, %s377
        %p379 = scmp.lt.s32.totalorder %s25, 1
        %s380 = scalar_select %p379, %s25, 1
        %s381 = smul.addr %s380, 8
        %s382 = smul.addr %s381, 4
        %s383 = scalar_lea.vmem %s2, %s382
        %p384 = scmp.lt.s32.totalorder %s25, 1
        %s385 = scalar_select %p384, %s25, 1
        %p386 = scmp.lt.s32.totalorder %s26, 0
        %s387 = scalar_select %p386, %s26, 0
        %s388 = sadd.s32 %s387, %s385
        %s389 = smul.addr %s388, 2
        %s390 = scalar_lea.vmem %s3, %s389
        %p391 = scmp.lt.s32.totalorder %s25, 1
        %s392 = scalar_select %p391, %s25, 1
        %p393 = scmp.lt.s32.totalorder %s26, 0
        %s394 = scalar_select %p393, %s26, 0
        %s395 = sadd.s32 %s394, %s392
        %s396 = smul.addr %s395, 8
        %s397 = scalar_lea.vmem %s4, %s396
        %v401 = vld [vmem:[%s390] sm:$0x3]
        %vm402 = vnez %v401
        loop: start=0, step=1, limit=8
        $region49: #{tpu_custom_call.1} parent=47 // loop_pre_header
          _
        $region50: #{tpu_custom_call.1} parent=47 // loop_header
          %s404 = sphi 0, %s408
          %p405 = scmp.ge.s32.totalorder %s404, 8
        $region51: #{tpu_custom_call.1} parent=47 // loop_header_branch
          %407 = sbr.rel (%p405) target = $region55
        $region52: #{tpu_custom_call.1} parent=47 // loop_body
          %s409 = smul.addr %s404, 4
          %s410 = scalar_lea.vmem %s373, %s409
          %v411 = vld [vmem:[%s410] sm:$0xf]
          %s412 = smul.addr %s404, 4
          %s413 = scalar_lea.vmem %s378, %s412
          %v414 = vld [vmem:[%s413] sm:$0xf]
          %s415 = smul.addr %s404, 4
          %s416 = scalar_lea.vmem %s383, %s415
          %v417 = vld [vmem:[%s416] sm:$0xf]
          %vm418 = vcmask 31744
          %v420 = vsel %vm418, %v411, 0
          %v423 = vsel %vm418, %v414, 0
          %425 = vmatprep.subr.bf16.mxu0 0
          %426 = vmatpush1.bf16.xpose.msra.mxu0 0
          %427 = vmatprep.subr.bf16.mxu0 0
          %428 = vmatpush1.bf16.xpose.msra.mxu0 0
          %429 = vmatprep.subr.bf16.mxu0 0
          %430 = vmatpush1.bf16.xpose.msra.mxu0 0
          %431 = vmatprep.subr.bf16.mxu0 0
          %432 = vmatpush1.bf16.xpose.msra.mxu0 0
          %433 = vmatprep.subr.bf16.mxu0 0
          %434 = vmatpush1.bf16.xpose.msra.mxu0 0
          %435 = vmatprep.subr.bf16.mxu0 0
          %436 = vmatpush1.bf16.xpose.msra.mxu0 0
          %437 = vmatprep.subr.bf16.mxu0 0
          %438 = vmatpush1.bf16.xpose.msra.mxu0 0
          %439 = vmatprep.subr.bf16.mxu0 0
          %440 = vmatpush1.bf16.xpose.msra.mxu0 %v423
          %441 = vmatprep.subr.bf16.mxu0 0
          %442 = vmatpush2.bf16.xpose.msra.mxu0 0
          %443 = vmatprep.subr.bf16.mxu0 0
          %444 = vmatpush2.bf16.xpose.msra.mxu0 0
          %445 = vmatprep.subr.bf16.mxu0 0
          %446 = vmatpush2.bf16.xpose.msra.mxu0 0
          %447 = vmatprep.subr.bf16.mxu0 0
          %448 = vmatpush2.bf16.xpose.msra.mxu0 0
          %449 = vmatprep.subr.bf16.mxu0 0
          %450 = vmatpush2.bf16.xpose.msra.mxu0 0
          %451 = vmatprep.subr.bf16.mxu0 0
          %452 = vmatpush2.bf16.xpose.msra.mxu0 0
          %453 = vmatprep.subr.bf16.mxu0 0
          %454 = vmatpush2.bf16.xpose.msra.mxu0 0
          %455 = vmatprep.subr.bf16.mxu0 0
          %456 = vmatpush2.bf16.xpose.msra.mxu0 0
          %457 = vmatprep.mubr.bf16.mxu0 0
          %458 = vmatmul.mubr.bf16.gmra.mxu0 %v420
          %v459 = vpop.f32.mrf.mxu0
          %v460 = vadd.f32 0.0, %v459
          %v461 = vpop.f32.mrf.mxu0
          %v462 = vpop.f32.mrf.mxu0
          %v463 = vpop.f32.mrf.mxu0
          %464 = vdwg.mxu0
          %v465 = vsel %vm402, 16843009, 0
          %v466 = vunpack.c.0.s8 %v465
          %vm467 = vcmp.ne.s32.totalorder %v466, 0
          %v468 = vsel %vm467, -1e+09, %v460
          %vm469 = vcmask 64512
          %v470 = vsel %vm469, %v468, -inf
          %471 = vmax.xlane.f32.xlu0 %v470
          %v472 = vpop.xlane.xlu0 %471
          %v473 = vsub.f32 %v468, %v472
          %v474 = vmul.f32 %v473, 1.442695
          %v475 = vpow.pop %v474
          %v476 = vsel %vm469, %v475, 0.0
          %477 = vadd.xlane.f32.xlu0 %v476
          %v478 = vpop.xlane.xlu0 %477
          %v479 = vrcp.pop %v478
          %v480 = vmul.f32 %v475, %v479
          %v481 = vpack.c.bf16 %v480, %v480
          %v483 = vsel %vm469, %v481, 0
          %vm485 = vcmask 1043456
          %v487 = vsel %vm485, %v417, 0
          %489 = vmatprep.subr.bf16.mxu0 0
          %490 = vmatpush1.bf16.msra.mxu0 0
          %491 = vmatprep.subr.bf16.mxu0 0
          %492 = vmatpush1.bf16.msra.mxu0 0
          %493 = vmatprep.subr.bf16.mxu0 0
          %494 = vmatpush1.bf16.msra.mxu0 0
          %495 = vmatprep.subr.bf16.mxu0 0
          %496 = vmatpush1.bf16.msra.mxu0 0
          %497 = vmatprep.subr.bf16.mxu0 0
          %498 = vmatpush1.bf16.msra.mxu0 0
          %499 = vmatprep.subr.bf16.mxu0 0
          %500 = vmatpush1.bf16.msra.mxu0 0
          %501 = vmatprep.subr.bf16.mxu0 0
          %502 = vmatpush1.bf16.msra.mxu0 0
          %503 = vmatprep.subr.bf16.mxu0 0
          %504 = vmatpush1.bf16.msra.mxu0 %v487
          %505 = vmatprep.subr.bf16.mxu0 0
          %506 = vmatpush2.bf16.msra.mxu0 0
          %507 = vmatprep.subr.bf16.mxu0 0
          %508 = vmatpush2.bf16.msra.mxu0 0
          %509 = vmatprep.subr.bf16.mxu0 0
          %510 = vmatpush2.bf16.msra.mxu0 0
          %511 = vmatprep.subr.bf16.mxu0 0
          %512 = vmatpush2.bf16.msra.mxu0 0
          %513 = vmatprep.subr.bf16.mxu0 0
          %514 = vmatpush2.bf16.msra.mxu0 0
          %515 = vmatprep.subr.bf16.mxu0 0
          %516 = vmatpush2.bf16.msra.mxu0 0
          %517 = vmatprep.subr.bf16.mxu0 0
          %518 = vmatpush2.bf16.msra.mxu0 0
          %519 = vmatprep.subr.bf16.mxu0 0
          %520 = vmatpush2.bf16.msra.mxu0 0
          %521 = vmatprep.mubr.bf16.mxu0 0
          %522 = vmatmul.mubr.bf16.gmra.mxu0 %v483
          %v523 = vpop.f32.mrf.mxu0
          %v524 = vadd.f32 0.0, %v523
          %v525 = vpop.f32.mrf.mxu0
          %v526 = vpop.f32.mrf.mxu0
          %v527 = vpop.f32.mrf.mxu0
          %528 = vdwg.mxu0
          %s529 = smul.u32 %s404, 8
          %s530 = scalar_lea.vmem [#allocation2], %s529
          %531 = vst.msk [vmem:[%s530] sm:$0xff] %vm418, %v524
        $region53: #{tpu_custom_call.1} parent=47 // loop_footer
          %s408 = sadd.s32 1, %s404
        $region54: #{tpu_custom_call.1} parent=47 // loop_footer_branch
          %403 = sbr.rel target = $region50
        $region55: #{tpu_custom_call.1} parent=47 // loop_exit
          _
        %v532 = vld [vmem:[#allocation2] sm:$0xff]
        %s533 = scalar_lea.vmem [#allocation2], 8
        %v534 = vld [vmem:[%s533] sm:$0xff]
        %s535 = scalar_lea.vmem [#allocation2], 16
        %v536 = vld [vmem:[%s535] sm:$0xff]
        %s537 = scalar_lea.vmem [#allocation2], 24
        %v538 = vld [vmem:[%s537] sm:$0xff]
        %s539 = scalar_lea.vmem [#allocation2], 32
        %v540 = vld [vmem:[%s539] sm:$0xff]
        %s541 = scalar_lea.vmem [#allocation2], 40
        %v542 = vld [vmem:[%s541] sm:$0xff]
        %s543 = scalar_lea.vmem [#allocation2], 48
        %v544 = vld [vmem:[%s543] sm:$0xff]
        %s545 = scalar_lea.vmem [#allocation2], 56
        %v546 = vld [vmem:[%s545] sm:$0xff]
        %548 = vrot.lane.b32.xlu0 %v534, 4
        %v549 = vpop.permute.xlu0 %548
        %552 = vrot.lane.b32.xlu0 %v536, 8
        %v553 = vpop.permute.xlu0 %552
        %556 = vrot.lane.b32.xlu0 %v538, 12
        %v557 = vpop.permute.xlu0 %556
        %560 = vrot.lane.b32.xlu0 %v540, 16
        %v561 = vpop.permute.xlu0 %560
        %564 = vrot.lane.b32.xlu0 %v542, 20
        %v565 = vpop.permute.xlu0 %564
        %568 = vrot.lane.b32.xlu0 %v544, 24
        %v569 = vpop.permute.xlu0 %568
        %572 = vrot.lane.b32.xlu0 %v546, 28
        %v573 = vpop.permute.xlu0 %572
        %vm575 = vcmask 31744
        %v576 = vsel %vm575, %v532, %v549
        %vm577 = vcmask 64512
        %v578 = vsel %vm577, %v576, %v553
        %vm579 = vcmask 97280
        %v580 = vsel %vm579, %v578, %v557
        %vm581 = vcmask 130048
        %v582 = vsel %vm581, %v580, %v561
        %vm583 = vcmask 162816
        %v584 = vsel %vm583, %v582, %v565
        %vm585 = vcmask 195584
        %v586 = vsel %vm585, %v584, %v569
        %vm587 = vcmask 228352
        %v588 = vsel %vm587, %v586, %v573
        %v589 = vld [vmem:[%s397] sm:$0xff]
        %v590 = vadd.f32 %v588, %v589
        %vm591 = vcmask 261120
        %v592 = vsel %vm591, %v590, 0.0
        %593 = vadd.xlane.f32.xlu0 %v592
        %v594 = vpop.xlane.xlu0 %593
        %v595 = vrcp.pop 32.0
        %v596 = vmul.f32 %v594, %v595
        %v597 = vsub.f32 %v590, %v596
        %v598 = vmul.f32 %v597, %v597
        %v599 = vsel %vm591, %v598, 0.0
        %600 = vadd.xlane.f32.xlu0 %v599
        %v601 = vpop.xlane.xlu0 %600
        %v602 = vmul.f32 %v601, %v595
        %v603 = vadd.f32 %v602, 1e-05
        %v604 = vrsqrt.pop %v603
        %v605 = vmul.f32 %v597, %v604
        %v606 = vld [vmem:[%s5] sm:$0x1]
        %v608 = vlaneseq
        %v609 = vshrl.u32 %v608, 7
        %v610 = vsub.s32 0, %v609
        %v611 = vrot.slane %v606, %v610
        %v613 = vmul.f32 %v605, %v611
        %v614 = vld [vmem:[%s6] sm:$0x1]
        %v616 = vlaneseq
        %v617 = vshrl.u32 %v616, 7
        %v618 = vsub.s32 0, %v617
        %v619 = vrot.slane %v614, %v618
        %v621 = vadd.f32 %v613, %v619
        %622 = vst.msk [vmem:[%s365] sm:$0xff] %vm591, %v621
        %s623 = sand.u32 %s221, 1
        %s624 = scalar_lea.sflag [#allocation4], %s623
        %s625 = sand.u32 %s221, 1
        %s626 = smul.addr %s625, 8
        %s627 = scalar_lea.vmem [#allocation3], %s626
        // Predicated region
        $region56: #{tpu_custom_call.1} parent=47 // pred_check
          %p628 = pneg %p231
        $region57: #{tpu_custom_call.1} parent=47 // pred_check_branch
          %630 = sbr.rel (%p628) target = $region59
        $region58: #{tpu_custom_call.1} parent=47 // pred_region
          %s632 = ssub.s32 128, 128
          %633 = vsyncadd %s624, %s632
          %s634 = sadd.s32 %s26, %s25
          %s635 = smul.addr %s634, 128
          %s636 = scalar_lea.hbm %s7, %s635
          %s638 = sshll.u32 %s627, 4
          %s639 = int_to_ptr.vmem [resolvable:$true] %s638
          %641 = dma.vmem_to_hbm [thread:$0]  %s639, 128, %s636, %s624
        $region59: #{tpu_custom_call.1} parent=47 // pred_fallthru
          _
      $region48: #{tpu_custom_call.1} parent=5 // pred_fallthru
        _
      %p642 = scmp.le.s32.totalorder 2, %s16
      // Predicated region
      $region60: #{tpu_custom_call.1} parent=5 // pred_check
        %p643 = pneg %p642
      $region61: #{tpu_custom_call.1} parent=5 // pred_check_branch
        %645 = sbr.rel (%p643) target = $region63
      $region62: #{tpu_custom_call.1} parent=5 // pred_region
        %s646 = ssub.s32 %s16, 2
        // Predicated region
        $region64: #{tpu_custom_call.1} parent=62 // pred_check
          %p647 = pneg %p237
        $region65: #{tpu_custom_call.1} parent=62 // pred_check_branch
          %649 = sbr.rel (%p647) target = $region67
        $region66: #{tpu_custom_call.1} parent=62 // pred_region
          %s650 = sand.u32 %s222, 1
          %s651 = scalar_lea.sflag [#allocation4], %s650
          %s652 = sand.u32 %s222, 1
          %s653 = smul.addr %s652, 8
          %s654 = scalar_lea.vmem [#allocation3], %s653
          %655 = dma.done %s651, 128
        $region67: #{tpu_custom_call.1} parent=62 // pred_fallthru
          _
      $region63: #{tpu_custom_call.1} parent=5 // pred_fallthru
        _
    $region6: #{tpu_custom_call.1} parent=1 // loop_footer
      %s20 = sadd.s32 1, %s16
    $region7: #{tpu_custom_call.1} parent=1 // loop_footer_branch
      %15 = sbr.rel target = $region3
    $region8: #{tpu_custom_call.1} parent=1 // loop_exit
      _
    %656 = vsyncpa [#allocation4], 1
    %s657 = scalar_lea.sflag [#allocation4], 1
    %658 = vsyncpa %s657, 1

</llo_original>
